<compile_context>
chip_gen: v7x
topology: tpu7x:2x2x1
jax: 0.10.0
libtpu: 0.0.40
codegen_flags: <defaults>
</compile_context>

<pallas_src>
import jax
import jax.numpy as jnp
from jax.experimental import pallas as pl
from jax.experimental.pallas import tpu as pltpu

NAATOKENS = 8                    # small synthetic vocab (module uses a constant)
D_INIT = NAATOKENS + 1 + 2       # = 11, as in the module __init__
D_MSA = 128                      # lane-dense hidden size for the test (prod uses 256)


def _extra_emb_kernel(msa_ref, w_ref, seqb_ref, out_ref):
    # msa_ref : (1, TN, L, d_init)
    # w_ref   : (d_init, d_msa)
    # seqb_ref: (1, L, d_msa)   -- seq embedding with the Linear bias folded in
    # out_ref : (1, TN, L, d_msa)
    x = msa_ref[0]                                   # (TN, L, d_init)
    tn, L, d_init = x.shape
    d_msa = w_ref.shape[1]
    # One big (TN*L, d_init) x (d_init, d_msa) matmul on the MXU.
    y = jnp.dot(x.reshape(tn * L, d_init), w_ref[...],
                preferred_element_type=jnp.float32)  # (TN*L, d_msa)
    # Broadcast the (bias-folded) seq embedding over the TN MSA rows.
    y = y.reshape(tn, L, d_msa) + seqb_ref[0][None]
    out_ref[0] = y.astype(out_ref.dtype)


def _pick_tn(N, L, d_init, d_msa, itemsize=4, budget_bytes=8 << 20):
    """Largest divisor of N such that one (input + output) slab, after lane
    padding to 128, stays within a conservative per-buffer VMEM budget
    (double-buffering + weights still fit v7x's 64 MiB VMEM)."""
    def pad128(d):
        return ((d + 127) // 128) * 128
    per_n = L * (pad128(d_init) + pad128(d_msa)) * itemsize
    cap = max(1, budget_bytes // per_n)
    tn = 1
    for d in range(1, N + 1):
        if N % d == 0 and d <= cap:
            tn = d
    return tn


def extra_emb_forward(msa, seq, emb_w, emb_b, emb_q_w):
    """msa: (B,N,L,d_init) f32; seq: (B,L) int32.
    emb_w: (d_msa, d_init) (PyTorch Linear layout), emb_b: (d_msa,),
    emb_q_w: (NAATOKENS, d_msa)."""
    B, N, L, d_init = msa.shape
    d_msa = emb_w.shape[0]
    itemsize = jnp.dtype(msa.dtype).itemsize

    w_t = jnp.transpose(emb_w)                                 # (d_init, d_msa)
    # Embedding gather + bias fold done once in plain JAX (glue).
    seq_plus_bias = jnp.take(emb_q_w, seq, axis=0) + emb_b[None, None, :]  # (B,L,d_msa)

    tn = _pick_tn(N, L, d_init, d_msa, itemsize)
    grid = (B, N // tn)

    cost = pl.CostEstimate(
        flops=2 * B * N * L * d_init * d_msa,
        transcendentals=0,
        bytes_accessed=(msa.size + B * N * L * d_msa
                        + w_t.size + seq_plus_bias.size) * itemsize)

    out = pl.pallas_call(
        _extra_emb_kernel,
        out_shape=jax.ShapeDtypeStruct((B, N, L, d_msa), msa.dtype),
        grid_spec=pltpu.PrefetchScalarGridSpec(
            num_scalar_prefetch=0,
            grid=grid,
            in_specs=[
                pl.BlockSpec((1, tn, L, d_init), lambda b, n: (b, n, 0, 0)),
                pl.BlockSpec((d_init, d_msa), lambda b, n: (0, 0)),
                pl.BlockSpec((1, L, d_msa), lambda b, n: (b, 0, 0)),
            ],
            out_specs=pl.BlockSpec((1, tn, L, d_msa), lambda b, n: (b, n, 0, 0)),
        ),
        compiler_params=pltpu.CompilerParams(
            dimension_semantics=("parallel", "parallel"),
            vmem_limit_bytes=32 << 20),
        cost_estimate=cost,
    )(msa, w_t, seq_plus_bias)
    return out


def _reference(msa, seq, emb_w, emb_b, emb_q_w):
    lin = jnp.einsum("bnli,oi->bnlo", msa, emb_w) + emb_b
    seq_e = jnp.take(emb_q_w, seq, axis=0)[:, None, :, :]
    return lin + seq_e


if __name__ == "__main__":
    key = jax.random.PRNGKey(0)
    k_msa, k_seq, k_w, k_q = jax.random.split(key, 4)

    B, N, L = 2, 4, 16
    msa = jax.random.normal(k_msa, (B, N, L, D_INIT), dtype=jnp.float32)
    seq = jax.random.randint(k_seq, (B, L), 0, NAATOKENS, dtype=jnp.int32)

    # Deterministic parameter init (synthetic, mirrors reset_parameter intent):
    #   emb: lecun-normal weights, zero bias; emb_q: standard normal.
    emb_w = jax.random.normal(k_w, (D_MSA, D_INIT), dtype=jnp.float32) * (
        1.0 / jnp.sqrt(jnp.float32(D_INIT)))
    emb_b = jnp.zeros((D_MSA,), dtype=jnp.float32)
    emb_q_w = jax.random.normal(k_q, (NAATOKENS, D_MSA), dtype=jnp.float32)

    out = extra_emb_forward(msa, seq, emb_w, emb_b, emb_q_w)
    out = jax.block_until_ready(out)

    ref = _reference(msa, seq, emb_w, emb_b, emb_q_w)
    assert out.shape == (B, N, L, D_MSA)
    assert jnp.allclose(out, ref, atol=1e-5, rtol=1e-5)

    print("KERNEL_OK")
</pallas_src>

<mosaic_0001>
module attributes {stable_mosaic.version = 11 : i64} {
  func.func @_extra_emb_kernel(%arg0: i32, %arg1: i32, %arg2: memref<1x4x16x11xf32, #tpu.memory_space<vmem>>, %arg3: memref<11x128xf32, #tpu.memory_space<vmem>>, %arg4: memref<1x16x128xf32, #tpu.memory_space<vmem>>, %arg5: memref<1x4x16x128xf32, #tpu.memory_space<vmem>>) attributes {dimension_semantics = [#tpu.dimension_semantics<parallel>, #tpu.dimension_semantics<parallel>], iteration_bounds = array<i64: 2, 1>, scalar_prefetch = 0 : i64, scratch_operands = 0 : i64, tpu.core_type = #tpu.core_type<tc>, window_params = [{transform_indices = @transform_0, window_bounds = array<i64: 1, 4, 16, 11>}, {pipeline_mode = #tpu.pipeline_mode<synchronous>, transform_indices = @transform_1, window_bounds = array<i64: 11, 128>}, {transform_indices = @transform_2, window_bounds = array<i64: 1, 16, 128>}, {transform_indices = @transform_3, window_bounds = array<i64: 1, 4, 16, 128>}]} {
    %c0 = arith.constant 0 : index
    %c0_0 = arith.constant 0 : index
    %c0_1 = arith.constant 0 : index
    %c0_2 = arith.constant 0 : index
    %0 = vector.load %arg2[%c0, %c0_0, %c0_1, %c0_2] : memref<1x4x16x11xf32, #tpu.memory_space<vmem>>, vector<1x4x16x11xf32>
    %1 = vector.shape_cast %0 : vector<1x4x16x11xf32> to vector<4x16x11xf32>
    %2 = vector.shape_cast %1 : vector<4x16x11xf32> to vector<64x11xf32>
    %c0_3 = arith.constant 0 : index
    %c0_4 = arith.constant 0 : index
    %3 = vector.load %arg3[%c0_3, %c0_4] : memref<11x128xf32, #tpu.memory_space<vmem>>, vector<11x128xf32>
    %cst = arith.constant dense<0.000000e+00> : vector<64x128xf32>
    %4 = tpu.matmul %2, %3, %cst {dimension_numbers = #tpu.dot_dimension_numbers<[1], [0], [0], [1], [0, 0, 1, 1], [], []>} : vector<64x11xf32>, vector<11x128xf32>, vector<64x128xf32> -> vector<64x128xf32>
    %5 = vector.shape_cast %4 : vector<64x128xf32> to vector<4x16x128xf32>
    %c0_5 = arith.constant 0 : index
    %c0_6 = arith.constant 0 : index
    %c0_7 = arith.constant 0 : index
    %6 = vector.load %arg4[%c0_5, %c0_6, %c0_7] : memref<1x16x128xf32, #tpu.memory_space<vmem>>, vector<1x16x128xf32>
    %7 = vector.shape_cast %6 : vector<1x16x128xf32> to vector<16x128xf32>
    %8 = vector.shape_cast %7 : vector<16x128xf32> to vector<1x16x128xf32>
    %9 = vector.broadcast %8 : vector<1x16x128xf32> to vector<4x16x128xf32>
    %10 = arith.addf %5, %9 : vector<4x16x128xf32>
    %c0_8 = arith.constant 0 : index
    %c0_9 = arith.constant 0 : index
    %c0_10 = arith.constant 0 : index
    %c0_11 = arith.constant 0 : index
    %11 = vector.load %arg5[%c0_8, %c0_9, %c0_10, %c0_11] : memref<1x4x16x128xf32, #tpu.memory_space<vmem>>, vector<1x4x16x128xf32>
    %12 = vector.shape_cast %11 : vector<1x4x16x128xf32> to vector<4x16x128xf32>
    %13 = vector.shape_cast %10 : vector<4x16x128xf32> to vector<1x4x16x128xf32>
    tpu.vector_store %arg5[%c0_8, %c0_9, %c0_10, %c0_11], %13 {strides = array<i32>} : memref<1x4x16x128xf32, #tpu.memory_space<vmem>>, vector<1x4x16x128xf32>,
    return
  }
  func.func @transform_0(%arg0: i32, %arg1: i32) -> (i32, i32, i32, i32) {
    %c0_i32 = arith.constant 0 : i32
    %c0_i32_0 = arith.constant 0 : i32
    %c0_i32_1 = arith.constant 0 : i32
    return %arg0, %arg1, %c0_i32, %c0_i32_0 : i32, i32, i32, i32
  }
  func.func @transform_1(%arg0: i32, %arg1: i32) -> (i32, i32) {
    %c0_i32 = arith.constant 0 : i32
    %c0_i32_0 = arith.constant 0 : i32
    %c0_i32_1 = arith.constant 0 : i32
    return %c0_i32, %c0_i32_0 : i32, i32
  }
  func.func @transform_2(%arg0: i32, %arg1: i32) -> (i32, i32, i32) {
    %c0_i32 = arith.constant 0 : i32
    %c0_i32_0 = arith.constant 0 : i32
    %c0_i32_1 = arith.constant 0 : i32
    return %arg0, %c0_i32, %c0_i32_0 : i32, i32, i32
  }
  func.func @transform_3(%arg0: i32, %arg1: i32) -> (i32, i32, i32, i32) {
    %c0_i32 = arith.constant 0 : i32
    %c0_i32_0 = arith.constant 0 : i32
    %c0_i32_1 = arith.constant 0 : i32
    return %arg0, %arg1, %c0_i32, %c0_i32_0 : i32, i32, i32, i32
  }
}

</mosaic_0001>

<llo_original>
// kernel: tpu_custom_call.1
$region0: #{tpu_custom_call.1}
  #allocation0 [shape = 'u32[]', space=smem, size = 0x4, offset = 0x4, fixed_abs, tag = 'smem constant byte address 0x4 - core index']
  #allocation1 [shape = 'u32[144,128]{1,0:T(1,128)}', space=vmem, size = 0x12000, scoped, tag = 'internal scratch']
  %s0 = inlined_call_operand.vmem [shape: f32[2,4,16,11], index: 0, kind: input, shape index: {}]
  %s1 = inlined_call_operand.vmem [shape: f32[11,128], index: 1, kind: input, shape index: {}]
  %s2 = inlined_call_operand.vmem [shape: f32[2,16,128], index: 2, kind: input, shape index: {}]
  %s3 = inlined_call_operand.hbm [shape: f32[2,4,16,128], index: 3, kind: output, shape index: {}]
  %s4 = sld [smem:[#allocation0]]
  $region45: #{tpu_custom_call.1} parent=0
    _
  %s6 = ssub.s32 1, %s4
  %s7 = scalar_select 0, %s6, %s4
  $region1: #{tpu_custom_call.1} parent=0
    #allocation2 [shape = 'u8[65536]{0}', space=vmem, size = 0x10000, scoped, tag = 'output window, operand 0']
    #allocation3 [shape = 's32[2]{0}', space=sflag, size = 0x8, scoped, tag = 'scoped memory for tpu_custom_call.1']
    %8 = vsyncpa [#allocation3], 0
    %s9 = scalar_lea.sflag [#allocation3], 1
    %10 = vsyncpa %s9, 0
    loop: start=0, step=1, limit=4
    $region2: #{tpu_custom_call.1} parent=1 // loop_pre_header
      _
    $region3: #{tpu_custom_call.1} parent=1 // loop_header
      %s12 = sphi 0, %s16
      %p13 = scmp.ge.s32.totalorder %s12, 4
      %s19 = sphi 0, %s31
      %s20 = sphi 0, %s27
      %s21 = sphi 0, %s19
      %s22 = sphi 0, %s20
      %s23 = sphi 0, %s21
      %s24 = sphi 0, %s22
      %s36 = sphi 0, %s38
      %s39 = sphi 0, %s36
      %s40 = sphi 0, %s39
      %s56 = sphi 0, %s40
      %s60 = sphi 0, %s60
      %s62 = sphi 0, %s60
      %s63 = sphi 0, %s62
      %s77 = sphi 0, %s63
      %s83 = sphi 0, %s85
      %s86 = sphi 0, %s83
      %s87 = sphi 0, %s86
      %s103 = sphi 0, %s87
      %s111 = sphi 0, %s113
      %s114 = sphi 0, %s111
      %s115 = sphi 0, %s114
      %s131 = sphi 0, %s115
    $region4: #{tpu_custom_call.1} parent=1 // loop_header_branch
      %15 = sbr.rel (%p13) target = $region8
    $region5: #{tpu_custom_call.1} parent=1 // loop_body
      %s17 = ssub.s32 %s12, 1
      %s18 = ssub.s32 %s12, 2
      %s25 = sadd.s32 1, %s20
      %p26 = scmp.ge.s32.totalorder %s25, 1
      %s27 = scalar_select %p26, 0, %s25
      %s28 = sadd.s32 1, %s19
      %s29 = scalar_select %p26, %s28, %s19
      %p30 = scmp.ge.s32.totalorder %s29, 2
      %s31 = scalar_select %p30, 0, %s29
      %s32 = ssub.s32 %s19, %s31
      %s33 = ssub.s32 %s20, %s27
      %s34 = sor.u32 %s32, %s33
      %p35 = scmp.eq.s32.totalorder %s34, 0
      %s37 = sadd.s32 %s36, 1
      %s38 = scalar_select %p35, %s36, %s37
      %p41 = pneg %p35
      %p42 = scmp.eq.s32.totalorder %s12, 1
      %p43 = por %p41, %p42
      %p44 = scmp.ne.s32.totalorder %s36, %s39
      %p45 = scmp.eq.s32.totalorder %s12, 0
      %p46 = por %p44, %p45
      %p47 = scmp.ne.s32.totalorder %s36, %s39
      %p48 = scmp.eq.s32.totalorder %s17, 1
      %p49 = por %p47, %p48
      %p50 = scmp.ne.s32.totalorder %s39, %s40
      %p51 = scmp.eq.s32.totalorder %s17, 0
      %p52 = por %p50, %p51
      %p53 = scmp.ne.s32.totalorder %s39, %s40
      %p54 = scmp.eq.s32.totalorder %s18, 1
      %p55 = por %p53, %p54
      %p57 = scmp.ne.s32.totalorder %s40, %s56
      %p58 = scmp.eq.s32.totalorder %s18, 0
      %p59 = por %p57, %p58
      %s61 = sadd.s32 %s60, 1
      %p64 = scmp.eq.s32.totalorder %s12, 1
      %p65 = scmp.ne.s32.totalorder %s60, %s62
      %p66 = scmp.eq.s32.totalorder %s12, 0
      %p67 = por %p65, %p66
      %p68 = scmp.ne.s32.totalorder %s60, %s62
      %p69 = scmp.eq.s32.totalorder %s17, 1
      %p70 = por %p68, %p69
      %p71 = scmp.ne.s32.totalorder %s62, %s63
      %p72 = scmp.eq.s32.totalorder %s17, 0
      %p73 = por %p71, %p72
      %p74 = scmp.ne.s32.totalorder %s62, %s63
      %p75 = scmp.eq.s32.totalorder %s18, 1
      %p76 = por %p74, %p75
      %p78 = scmp.ne.s32.totalorder %s63, %s77
      %p79 = scmp.eq.s32.totalorder %s18, 0
      %p80 = por %p78, %p79
      %s81 = ssub.s32 %s19, %s31
      %p82 = scmp.eq.s32.totalorder %s81, 0
      %s84 = sadd.s32 %s83, 1
      %s85 = scalar_select %p82, %s83, %s84
      %p88 = pneg %p82
      %p89 = scmp.eq.s32.totalorder %s12, 1
      %p90 = por %p88, %p89
      %p91 = scmp.ne.s32.totalorder %s83, %s86
      %p92 = scmp.eq.s32.totalorder %s12, 0
      %p93 = por %p91, %p92
      %p94 = scmp.ne.s32.totalorder %s83, %s86
      %p95 = scmp.eq.s32.totalorder %s17, 1
      %p96 = por %p94, %p95
      %p97 = scmp.ne.s32.totalorder %s86, %s87
      %p98 = scmp.eq.s32.totalorder %s17, 0
      %p99 = por %p97, %p98
      %p100 = scmp.ne.s32.totalorder %s86, %s87
      %p101 = scmp.eq.s32.totalorder %s18, 1
      %p102 = por %p100, %p101
      %p104 = scmp.ne.s32.totalorder %s87, %s103
      %p105 = scmp.eq.s32.totalorder %s18, 0
      %p106 = por %p104, %p105
      %s107 = ssub.s32 %s19, %s31
      %s108 = ssub.s32 %s20, %s27
      %s109 = sor.u32 %s107, %s108
      %p110 = scmp.eq.s32.totalorder %s109, 0
      %s112 = sadd.s32 %s111, 1
      %s113 = scalar_select %p110, %s111, %s112
      %p116 = pneg %p110
      %p117 = scmp.eq.s32.totalorder %s12, 1
      %p118 = por %p116, %p117
      %p119 = scmp.ne.s32.totalorder %s111, %s114
      %p120 = scmp.eq.s32.totalorder %s12, 0
      %p121 = por %p119, %p120
      %p122 = scmp.ne.s32.totalorder %s111, %s114
      %p123 = scmp.eq.s32.totalorder %s17, 1
      %p124 = por %p122, %p123
      %p125 = scmp.ne.s32.totalorder %s114, %s115
      %p126 = scmp.eq.s32.totalorder %s17, 0
      %p127 = por %p125, %p126
      %p128 = scmp.ne.s32.totalorder %s114, %s115
      %p129 = scmp.eq.s32.totalorder %s18, 1
      %p130 = por %p128, %p129
      %p132 = scmp.ne.s32.totalorder %s115, %s131
      %p133 = scmp.eq.s32.totalorder %s18, 0
      %p134 = por %p132, %p133
      %p135 = scmp.le.s32.totalorder 1, %s12
      %p136 = scmp.lt.s32.totalorder %s12, 3
      %p137 = pnand %p135, %p136
      %p138 = pneg %p137
      // Predicated region
      $region9: #{tpu_custom_call.1} parent=5 // pred_check
        _
      $region10: #{tpu_custom_call.1} parent=5 // pred_check_branch
        %140 = sbr.rel (%p137) target = $region12
      $region11: #{tpu_custom_call.1} parent=5 // pred_region
        %s141 = ssub.s32 %s12, 1
        // Predicated region
        $region13: #{tpu_custom_call.1} parent=11 // pred_check
          %p142 = pneg %p73
        $region14: #{tpu_custom_call.1} parent=11 // pred_check_branch
          %144 = sbr.rel (%p142) target = $region16
        $region15: #{tpu_custom_call.1} parent=11 // pred_region
          _
        $region16: #{tpu_custom_call.1} parent=11 // pred_fallthru
          _
      $region12: #{tpu_custom_call.1} parent=5 // pred_fallthru
        _
      %p145 = scmp.lt.s32.totalorder %s12, 2
      // Predicated region
      $region17: #{tpu_custom_call.1} parent=5 // pred_check
        %p146 = pneg %p145
      $region18: #{tpu_custom_call.1} parent=5 // pred_check_branch
        %148 = sbr.rel (%p146) target = $region20
      $region19: #{tpu_custom_call.1} parent=5 // pred_region
        // Predicated region
        $region21: #{tpu_custom_call.1} parent=19 // pred_check
          %p149 = pneg %p46
        $region22: #{tpu_custom_call.1} parent=19 // pred_check_branch
          %151 = sbr.rel (%p149) target = $region24
        $region23: #{tpu_custom_call.1} parent=19 // pred_region
          %s152 = smul.u32 4, %s20
          %p153 = scmp.lt.s32.totalorder %s19, 1
          %s154 = scalar_select %p153, %s19, 1
          %p155 = scmp.lt.s32.totalorder %s152, 3
          %s156 = scalar_select %p155, %s152, 3
          %s157 = smul.addr %s156, 2
          %s158 = smul.addr %s154, 8
          %s159 = sadd.s32 %s157, %s158
          %s160 = smul.addr %s159, 8
          %s161 = scalar_lea.vmem %s0, %s160
          %s162 = smul.u32 4, %s20
        $region24: #{tpu_custom_call.1} parent=19 // pred_fallthru
          _
        // Predicated region
        $region25: #{tpu_custom_call.1} parent=19 // pred_check
          %p163 = pneg %p93
        $region26: #{tpu_custom_call.1} parent=19 // pred_check_branch
          %165 = sbr.rel (%p163) target = $region28
        $region27: #{tpu_custom_call.1} parent=19 // pred_region
          %p166 = scmp.lt.s32.totalorder %s19, 1
          %s167 = scalar_select %p166, %s19, 1
          %s168 = smul.addr %s167, 2
          %s169 = smul.addr %s168, 8
          %s170 = scalar_lea.vmem %s2, %s169
        $region28: #{tpu_custom_call.1} parent=19 // pred_fallthru
          _
      $region20: #{tpu_custom_call.1} parent=5 // pred_fallthru
        _
      %p171 = scmp.le.s32.totalorder 1, %s12
      %p172 = scmp.lt.s32.totalorder %s12, 3
      %p173 = pnand %p171, %p172
      %p174 = pneg %p173
      // Predicated region
      $region29: #{tpu_custom_call.1} parent=5 // pred_check
        _
      $region30: #{tpu_custom_call.1} parent=5 // pred_check_branch
        %176 = sbr.rel (%p173) target = $region32
      $region31: #{tpu_custom_call.1} parent=5 // pred_region
        %s177 = ssub.s32 %s12, 1
        %s178 = smul.u32 4, %s22
        %p179 = scmp.lt.s32.totalorder %s21, 1
        %s180 = scalar_select %p179, %s21, 1
        %p181 = scmp.lt.s32.totalorder %s178, 3
        %s182 = scalar_select %p181, %s178, 3
        %s183 = smul.addr %s182, 2
        %s184 = smul.addr %s180, 8
        %s185 = sadd.s32 %s183, %s184
        %s186 = smul.addr %s185, 8
        %s187 = scalar_lea.vmem %s0, %s186
        %p188 = pneg %p52
        %p189 = pneg %p49
        %p190 = pneg %p73
        %p191 = pneg %p70
        %p192 = scmp.lt.s32.totalorder %s21, 1
        %s193 = scalar_select %p192, %s21, 1
        %s194 = smul.addr %s193, 2
        %s195 = smul.addr %s194, 8
        %s196 = scalar_lea.vmem %s2, %s195
        %p197 = pneg %p99
        %p198 = pneg %p96
        %p199 = pneg %p127
        %p200 = pneg %p124
        %s201 = sand.u32 %s114, 1
        %s202 = scalar_lea.sflag [#allocation3], %s201
        %s203 = sand.u32 %s114, 1
        %s204 = smul.addr %s203, 64
        %s205 = scalar_lea.vmem [#allocation2], %s204
        %s206 = smul.u32 4, %s22
        %p207 = scmp.lt.s32.totalorder %s21, 1
        %s208 = scalar_select %p207, %s21, 1
        %p209 = scmp.lt.s32.totalorder %s206, 3
        %s210 = scalar_select %p209, %s206, 3
        %s211 = smul.addr %s210, 2
        %s212 = smul.addr %s208, 8
        %s213 = sadd.s32 %s211, %s212
        %s214 = smul.addr %s213, 8
        %s215 = scalar_lea.vmem %s0, %s214
        %s216 = smul.u32 4, %s22
        %p217 = scmp.lt.s32.totalorder %s21, 1
        %s218 = scalar_select %p217, %s21, 1
        %s219 = smul.addr %s218, 2
        %s220 = smul.addr %s219, 8
        %s221 = scalar_lea.vmem %s2, %s220
        %s222 = smul.u32 4, %s22
        %v223 = vld [vmem:[%s215] sm:$0xff]
        %v224 = vld [vmem:[%s215 + $0x8] sm:$0xff]
        %v225 = vld [vmem:[%s215 + $0x10] sm:$0xff]
        %v226 = vld [vmem:[%s215 + $0x18] sm:$0xff]
        %v227 = vld [vmem:[%s215 + $0x20] sm:$0xff]
        %v228 = vld [vmem:[%s215 + $0x28] sm:$0xff]
        %v229 = vld [vmem:[%s215 + $0x30] sm:$0xff]
        %v230 = vld [vmem:[%s215 + $0x38] sm:$0xff]
        %v231 = vld [vmem:[%s1] sm:$0xff]
        %v232 = vld [vmem:[%s1 + $0x8] sm:$0x7]
        %vm233 = vcmask 89088
        %v235 = vsel %vm233, %v223, 0
        %v238 = vsel %vm233, %v224, 0
        %v241 = vsel %vm233, %v225, 0
        %v244 = vsel %vm233, %v226, 0
        %v247 = vsel %vm233, %v227, 0
        %v250 = vsel %vm233, %v228, 0
        %v253 = vsel %vm233, %v229, 0
        %v256 = vsel %vm233, %v230, 0
        %vm258 = vcmask 1042432
        %v260 = vsel %vm258, %v232, 0
        %262 = vmatprep.subr.mxu0 0.0
        %263 = vmatpush1.msra.mxu0 %v231
        %264 = vmatprep.subr.mxu0 0.0
        %265 = vmatpush1.msra.mxu0 %v260
        %266 = vmatprep.subr.mxu0 0.0
        %267 = vmatpush1.msra.mxu0 0.0
        %268 = vmatprep.subr.mxu0 0.0
        %269 = vmatpush1.msra.mxu0 0.0
        %270 = vmatprep.subr.mxu0 0.0
        %271 = vmatpush1.msra.mxu0 0.0
        %272 = vmatprep.subr.mxu0 0.0
        %273 = vmatpush1.msra.mxu0 0.0
        %274 = vmatprep.subr.mxu0 0.0
        %275 = vmatpush1.msra.mxu0 0.0
        %276 = vmatprep.subr.mxu0 0.0
        %277 = vmatpush1.msra.mxu0 0.0
        %278 = vmatprep.subr.mxu0 0.0
        %279 = vmatpush1.msra.mxu0 0.0
        %280 = vmatprep.subr.mxu0 0.0
        %281 = vmatpush1.msra.mxu0 0.0
        %282 = vmatprep.subr.mxu0 0.0
        %283 = vmatpush1.msra.mxu0 0.0
        %284 = vmatprep.subr.mxu0 0.0
        %285 = vmatpush1.msra.mxu0 0.0
        %286 = vmatprep.subr.mxu0 0.0
        %287 = vmatpush1.msra.mxu0 0.0
        %288 = vmatprep.subr.mxu0 0.0
        %289 = vmatpush1.msra.mxu0 0.0
        %290 = vmatprep.subr.mxu0 0.0
        %291 = vmatpush1.msra.mxu0 0.0
        %292 = vmatprep.subr.mxu0 0.0
        %293 = vmatpush1.msra.mxu0 0.0
        %294 = vmatprep.subr.mxu0 0.0
        %295 = vmatpush1.msra.mxu0 0.0
        %296 = vmatprep.subr.mxu0 0.0
        %297 = vmatpush1.msra.mxu0 0.0
        %298 = vmatprep.subr.mxu0 0.0
        %299 = vmatpush1.msra.mxu0 0.0
        %300 = vmatprep.subr.mxu0 0.0
        %301 = vmatpush1.msra.mxu0 0.0
        %302 = vmatprep.subr.mxu0 0.0
        %303 = vmatpush1.msra.mxu0 0.0
        %304 = vmatprep.subr.mxu0 0.0
        %305 = vmatpush1.msra.mxu0 0.0
        %306 = vmatprep.subr.mxu0 0.0
        %307 = vmatpush1.msra.mxu0 0.0
        %308 = vmatprep.subr.mxu0 0.0
        %309 = vmatpush1.msra.mxu0 0.0
        %310 = vmatprep.subr.mxu0 0.0
        %311 = vmatpush1.msra.mxu0 0.0
        %312 = vmatprep.subr.mxu0 0.0
        %313 = vmatpush1.msra.mxu0 0.0
        %314 = vmatprep.subr.mxu0 0.0
        %315 = vmatpush1.msra.mxu0 0.0
        %316 = vmatprep.subr.mxu0 0.0
        %317 = vmatpush1.msra.mxu0 0.0
        %318 = vmatprep.subr.mxu0 0.0
        %319 = vmatpush1.msra.mxu0 0.0
        %320 = vmatprep.subr.mxu0 0.0
        %321 = vmatpush1.msra.mxu0 0.0
        %322 = vmatprep.subr.mxu0 0.0
        %323 = vmatpush1.msra.mxu0 0.0
        %324 = vmatprep.subr.mxu0 0.0
        %325 = vmatpush1.msra.mxu0 0.0
        %326 = vmatprep.mubr.f32.mxu0 0.0
        %327 = vmatmul.mubr.f32.gmra.mrb[0].mxu0 %v235
        %v328 = vpop.f32.mrb[0].mxu0
        %v329 = vadd.f32 0.0, %v328
        %v330 = vpop.f32.mrb[0].mxu0
        %331 = vmatprep.mubr.f32.mxu0 0.0
        %332 = vmatmul.mubr.f32.gmra.mrb[0].mxu0 %v238
        %v333 = vpop.f32.mrb[0].mxu0
        %v334 = vadd.f32 0.0, %v333
        %v335 = vpop.f32.mrb[0].mxu0
        %336 = vmatprep.mubr.f32.mxu0 0.0
        %337 = vmatmul.mubr.f32.gmra.mrb[0].mxu0 %v241
        %v338 = vpop.f32.mrb[0].mxu0
        %v339 = vadd.f32 0.0, %v338
        %v340 = vpop.f32.mrb[0].mxu0
        %341 = vmatprep.mubr.f32.mxu0 0.0
        %342 = vmatmul.mubr.f32.gmra.mrb[0].mxu0 %v244
        %v343 = vpop.f32.mrb[0].mxu0
        %v344 = vadd.f32 0.0, %v343
        %v345 = vpop.f32.mrb[0].mxu0
        %346 = vmatprep.mubr.f32.mxu0 0.0
        %347 = vmatmul.mubr.f32.gmra.mrb[0].mxu0 %v247
        %v348 = vpop.f32.mrb[0].mxu0
        %v349 = vadd.f32 0.0, %v348
        %v350 = vpop.f32.mrb[0].mxu0
        %351 = vmatprep.mubr.f32.mxu0 0.0
        %352 = vmatmul.mubr.f32.gmra.mrb[0].mxu0 %v250
        %v353 = vpop.f32.mrb[0].mxu0
        %v354 = vadd.f32 0.0, %v353
        %v355 = vpop.f32.mrb[0].mxu0
        %356 = vmatprep.mubr.f32.mxu0 0.0
        %357 = vmatmul.mubr.f32.gmra.mrb[0].mxu0 %v253
        %v358 = vpop.f32.mrb[0].mxu0
        %v359 = vadd.f32 0.0, %v358
        %v360 = vpop.f32.mrb[0].mxu0
        %361 = vmatprep.mubr.f32.mxu0 0.0
        %362 = vmatmul.mubr.f32.gmra.mrb[0].mxu0 %v256
        %v363 = vpop.f32.mrb[0].mxu0
        %v364 = vadd.f32 0.0, %v363
        %v365 = vpop.f32.mrb[0].mxu0
        %366 = vdwg.mxu0
        %v367 = vld [vmem:[%s221] sm:$0xff]
        %v368 = vld [vmem:[%s221 + $0x8] sm:$0xff]
        %v369 = vadd.f32 %v329, %v367
        %v370 = vadd.f32 %v334, %v368
        %v371 = vadd.f32 %v339, %v367
        %v372 = vadd.f32 %v344, %v368
        %v373 = vadd.f32 %v349, %v367
        %v374 = vadd.f32 %v354, %v368
        %v375 = vadd.f32 %v359, %v367
        %v376 = vadd.f32 %v364, %v368
        %377 = vst [vmem:[%s205] sm:$0xff] %v369
        %378 = vst [vmem:[%s205 + $0x8] sm:$0xff] %v370
        %379 = vst [vmem:[%s205 + $0x10] sm:$0xff] %v371
        %380 = vst [vmem:[%s205 + $0x18] sm:$0xff] %v372
        %381 = vst [vmem:[%s205 + $0x20] sm:$0xff] %v373
        %382 = vst [vmem:[%s205 + $0x28] sm:$0xff] %v374
        %383 = vst [vmem:[%s205 + $0x30] sm:$0xff] %v375
        %384 = vst [vmem:[%s205 + $0x38] sm:$0xff] %v376
        %s385 = sand.u32 %s114, 1
        %s386 = scalar_lea.sflag [#allocation3], %s385
        %s387 = sand.u32 %s114, 1
        %s388 = smul.addr %s387, 64
        %s389 = scalar_lea.vmem [#allocation2], %s388
        // Predicated region
        $region33: #{tpu_custom_call.1} parent=31 // pred_check
          %p390 = pneg %p124
        $region34: #{tpu_custom_call.1} parent=31 // pred_check_branch
          %392 = sbr.rel (%p390) target = $region36
        $region35: #{tpu_custom_call.1} parent=31 // pred_region
          %s393 = smul.u32 4, %s22
          %s395 = ssub.s32 1024, 1024
          %396 = vsyncadd %s386, %s395
          %s397 = smul.addr %s393, 2
          %s398 = smul.addr %s21, 8
          %s399 = sadd.s32 %s397, %s398
          %s400 = smul.addr %s399, 128
          %s401 = scalar_lea.hbm %s3, %s400
          %s402 = sshll.u32 %s389, 4
          %s403 = int_to_ptr.vmem [resolvable:$true] %s402
          %408 = dma.vmem_to_hbm [thread:$0]  %s403, 1024, %s401, %s386, 128, 128, 8
        $region36: #{tpu_custom_call.1} parent=31 // pred_fallthru
          _
      $region32: #{tpu_custom_call.1} parent=5 // pred_fallthru
        _
      %p409 = scmp.le.s32.totalorder 2, %s12
      // Predicated region
      $region37: #{tpu_custom_call.1} parent=5 // pred_check
        %p410 = pneg %p409
      $region38: #{tpu_custom_call.1} parent=5 // pred_check_branch
        %412 = sbr.rel (%p410) target = $region40
      $region39: #{tpu_custom_call.1} parent=5 // pred_region
        %s413 = ssub.s32 %s12, 2
        // Predicated region
        $region41: #{tpu_custom_call.1} parent=39 // pred_check
          %p414 = pneg %p130
        $region42: #{tpu_custom_call.1} parent=39 // pred_check_branch
          %416 = sbr.rel (%p414) target = $region44
        $region43: #{tpu_custom_call.1} parent=39 // pred_region
          %s417 = sand.u32 %s115, 1
          %s418 = scalar_lea.sflag [#allocation3], %s417
          %s419 = sand.u32 %s115, 1
          %s420 = smul.addr %s419, 64
          %s421 = scalar_lea.vmem [#allocation2], %s420
          %422 = dma.done %s418, 1024
        $region44: #{tpu_custom_call.1} parent=39 // pred_fallthru
          _
      $region40: #{tpu_custom_call.1} parent=5 // pred_fallthru
        _
    $region6: #{tpu_custom_call.1} parent=1 // loop_footer
      %s16 = sadd.s32 1, %s12
    $region7: #{tpu_custom_call.1} parent=1 // loop_footer_branch
      %11 = sbr.rel target = $region3
    $region8: #{tpu_custom_call.1} parent=1 // loop_exit
      _
    %423 = vsyncpa [#allocation3], 1
    %s424 = scalar_lea.sflag [#allocation3], 1
    %425 = vsyncpa %s424, 1

</llo_original>
